<compile_context>
chip_gen: v7x
topology: tpu7x:2x2x1
jax: 0.10.0
libtpu: 0.0.40
codegen_flags: <defaults>
</compile_context>

<pallas_src>
import jax
import jax.numpy as jnp
from jax.experimental import pallas as pl
from jax.experimental.pallas import tpu as pltpu


# ----------------------------------------------------------- generation sniff

def _tpu_generation():
    """Best-effort TPU generation detection ('v5e' / 'v6e' / 'v7x' / None)."""
    try:
        kind = jax.devices()[0].device_kind.lower()
    except Exception:  # pragma: no cover - no devices / CPU fallback
        return None
    if "v7" in kind or "tpu7" in kind:
        return "v7x"
    if "v6" in kind:
        return "v6e"
    if "v5" in kind and ("lite" in kind or "v5e" in kind):
        return "v5e"
    return None


_GEN = _tpu_generation()

# Tile bytes / VMEM limit per generation (review: 4 MiB on v7x, 8 MiB on
# v5e/v6e; conservative 4 MiB / 48 MiB for unknown chips).
if _GEN == "v7x":
    _TARGET_TILE_BYTES = 4 * 1024 * 1024
    _VMEM_LIMIT_BYTES = 48 * 1024 * 1024
elif _GEN in ("v5e", "v6e"):
    _TARGET_TILE_BYTES = 8 * 1024 * 1024
    _VMEM_LIMIT_BYTES = 64 * 1024 * 1024
else:
    _TARGET_TILE_BYTES = 4 * 1024 * 1024
    _VMEM_LIMIT_BYTES = 48 * 1024 * 1024

# Native sub-32-bit VALU math only on v6e/v7x; keep f32 compute elsewhere.
_NATIVE_NARROW_VALU = _GEN in ("v6e", "v7x")


# ------------------------------------------------------------------ kernel

def _make_neg_scale_kernel(compute_dtype):
    def _neg_scale_kernel(lam_ref, g_ref, o_ref):
        # grad_x = -lambda_ * grad_y ; lambda_ read from SMEM at runtime.
        scale = (-lam_ref[0]).astype(compute_dtype)
        o_ref[...] = (scale * g_ref[...].astype(compute_dtype)).astype(o_ref.dtype)

    return _neg_scale_kernel


# --------------------------------------------------------------- launcher

def _sublane(dtype):
    # Sublane packing for the second-to-last block dim.
    return {4: 8, 2: 16, 1: 32}.get(jnp.dtype(dtype).itemsize, 8)


def _compute_dtype(dtype):
    dt = jnp.dtype(dtype)
    if dt.itemsize < 4 and _NATIVE_NARROW_VALU and jnp.issubdtype(dt, jnp.floating):
        return dtype  # native bf16/fp16 VALU on v6e/v7x
    if jnp.issubdtype(dt, jnp.floating):
        return jnp.float32
    return dtype


def _pick_tile_rows(rows, lanes, itemsize, sub):
    row_bytes = lanes * itemsize
    if rows * row_bytes <= _TARGET_TILE_BYTES:
        return rows  # a single full tile
    target = max(sub, (_TARGET_TILE_BYTES // row_bytes) // sub * sub)
    target = min(target, rows)
    # Prefer a divisor of rows -> the final grid step is a full tile
    # (unmasked vst, fully utilized DMA).
    cand = (target // sub) * sub
    while cand >= sub:
        if rows % cand == 0:
            return cand
        cand -= sub
    return target  # ragged final tile; Pallas masks it correctly


def _neg_scale_pallas(g, lam):
    """Compute -lam * g with a Pallas kernel (lam is a (1,) f32 array)."""
    n = g.size
    if n == 0:
        return g

    comp_dt = _compute_dtype(g.dtype)

    # Widest lane-dense slab that divides the element count (no padding).
    lanes = None
    for cand in (1024, 512, 256, 128):
        if n % cand == 0:
            lanes = cand
            break
    if lanes is None:
        # TODO(synk): element counts not divisible by 128 fall back to XLA
        # (fused elementwise), avoiding pad/concat copies around the kernel.
        return ((-lam[0]).astype(comp_dt) * g.astype(comp_dt)).astype(g.dtype)

    rows = n // lanes
    slab = g.reshape(rows, lanes)  # metadata-only reshape, no HBM copy

    itemsize = jnp.dtype(g.dtype).itemsize
    sub = _sublane(g.dtype)
    tile_rows = _pick_tile_rows(rows, lanes, itemsize, sub)
    grid = (pl.cdiv(rows, tile_rows),)

    out = pl.pallas_call(
        _make_neg_scale_kernel(comp_dt),
        out_shape=jax.ShapeDtypeStruct((rows, lanes), g.dtype),
        grid_spec=pltpu.PrefetchScalarGridSpec(
            num_scalar_prefetch=0,
            grid=grid,
            in_specs=[
                # lambda_ lives in SMEM (untiled, read each grid step).
                pl.BlockSpec(memory_space=pltpu.MemorySpace.SMEM),
                pl.BlockSpec((tile_rows, lanes), lambda i: (i, 0)),
            ],
            out_specs=pl.BlockSpec((tile_rows, lanes), lambda i: (i, 0)),
        ),
        # Donate the gradient slab; the scale is done in place.
        input_output_aliases={1: 0},
        compiler_params=pltpu.CompilerParams(
            # TODO(synk): on v7x, verify with xprof that both TensorCores
            # stream; if not, switch this axis to pltpu.CORE_PARALLEL.
            dimension_semantics=("parallel",),
            vmem_limit_bytes=_VMEM_LIMIT_BYTES,
        ),
    )(lam, slab)
    return out.reshape(g.shape)


def _neg_scale_fused(g, lam):
    """XLA path: lets the -lambda scale fuse into adjacent cotangent ops."""
    comp_dt = _compute_dtype(g.dtype)
    return ((-lam[0]).astype(comp_dt) * g.astype(comp_dt)).astype(g.dtype)


# --------------------------------------------------- gradient reversal op

@jax.custom_vjp
def _grl_pallas(x, lam):
    # Forward: identity. No kernel, no copy.
    return x


def _grl_pallas_fwd(x, lam):
    return x, lam


def _grl_pallas_bwd(lam, g):
    return _neg_scale_pallas(g, lam), jnp.zeros_like(lam)


_grl_pallas.defvjp(_grl_pallas_fwd, _grl_pallas_bwd)


@jax.custom_vjp
def _grl_fused(x, lam):
    return x


def _grl_fused_fwd(x, lam):
    return x, lam


def _grl_fused_bwd(lam, g):
    return _neg_scale_fused(g, lam), jnp.zeros_like(lam)


_grl_fused.defvjp(_grl_fused_fwd, _grl_fused_bwd)


def gradient_reversal(x, lambda_=1.0, use_pallas=True):
    # lambda_ is a runtime value (Python float or traced scalar): no
    # recompilation when it changes during training.
    lam = jnp.asarray(lambda_, dtype=jnp.float32).reshape(1)
    if use_pallas:
        return _grl_pallas(x, lam)
    return _grl_fused(x, lam)


class GradientReversalLayer:
    """JAX/Pallas port of the PyTorch GradientReversalLayer (no parameters)."""

    def __init__(self, lambda_=1.0, use_pallas=True):
        self.lambda_ = lambda_
        self.use_pallas = use_pallas

    def __call__(self, x):
        return gradient_reversal(x, self.lambda_, self.use_pallas)


# ------------------------------------------------------------------ main

if __name__ == "__main__":
    key = jax.random.PRNGKey(0)
    x = jax.random.normal(key, (2, 4, 16, 16), dtype=jnp.float32)  # NCHW

    layer = GradientReversalLayer(lambda_=0.5)

    # Forward: must be the identity.
    y = layer(x)
    jax.block_until_ready(y)
    assert y.shape == x.shape and y.dtype == x.dtype
    assert jnp.allclose(y, x), "forward is not identity"

    # Backward (Pallas path): grad wrt x of sum(y) should be -lambda_.
    grad_x = jax.grad(lambda v: jnp.sum(layer(v)))(x)
    jax.block_until_ready(grad_x)
    assert jnp.allclose(grad_x, jnp.full_like(x, -0.5)), "backward scaling wrong"

    # Lambda is a runtime scalar: a different value reuses the same kernel.
    grad_x2 = jax.grad(lambda v: jnp.sum(gradient_reversal(v, 1.25)))(x)
    jax.block_until_ready(grad_x2)
    assert jnp.allclose(grad_x2, jnp.full_like(x, -1.25)), "lambda scaling wrong"

    # bf16 gradients: exercises the native-dtype (v6e/v7x) / f32 (v5e) path.
    x16 = jax.random.normal(key, (2, 4, 16, 16)).astype(jnp.bfloat16)
    grad_x16 = jax.grad(lambda v: jnp.sum(layer(v).astype(jnp.float32)))(x16)
    jax.block_until_ready(grad_x16)
    assert grad_x16.dtype == jnp.bfloat16
    assert jnp.allclose(grad_x16.astype(jnp.float32), -0.5), "bf16 scaling wrong"

    # Element count not divisible by 128: XLA fallback path.
    x_odd = jnp.arange(15, dtype=jnp.float32).reshape(3, 5)
    grad_odd = jax.grad(lambda v: jnp.sum(gradient_reversal(v, 2.0)))(x_odd)
    jax.block_until_ready(grad_odd)
    assert jnp.allclose(grad_odd, jnp.full_like(x_odd, -2.0)), "fallback wrong"

    # Fully-fused (no-kernel) variant gives the same answer.
    grad_fused = jax.grad(
        lambda v: jnp.sum(gradient_reversal(v, 0.5, use_pallas=False)))(x)
    jax.block_until_ready(grad_fused)
    assert jnp.allclose(grad_fused, grad_x), "fused path disagrees"

    print("KERNEL_OK")
</pallas_src>

<mosaic_0001>
module attributes {stable_mosaic.version = 11 : i64} {
  func.func @_neg_scale_kernel(%arg0: i32, %arg1: memref<1xf32, #tpu.memory_space<smem>>, %arg2: memref<2x1024xf32, #tpu.memory_space<vmem>>, %arg3: memref<2x1024xf32, #tpu.memory_space<vmem>>) attributes {dimension_semantics = [#tpu.dimension_semantics<parallel>], iteration_bounds = array<i64: 1>, scalar_prefetch = 0 : i64, scratch_operands = 0 : i64, tpu.core_type = #tpu.core_type<tc>, window_params = [{transform_indices = @transform_0, window_bounds = array<i64: 1>}, {transform_indices = @transform_1, window_bounds = array<i64: 2, 1024>}, {transform_indices = @transform_2, window_bounds = array<i64: 2, 1024>}]} {
    %c0 = arith.constant 0 : index
    %0 = memref.load %arg1[%c0] : memref<1xf32, #tpu.memory_space<smem>>
    %cst = arith.constant 0.000000e+00 : f32
    %1 = arith.subf %cst, %0 : f32
    %c0_0 = arith.constant 0 : index
    %c0_1 = arith.constant 0 : index
    %2 = vector.load %arg2[%c0_0, %c0_1] : memref<2x1024xf32, #tpu.memory_space<vmem>>, vector<2x1024xf32>
    %3 = vector.broadcast %1 : f32 to vector<2x1024xf32>
    %4 = arith.mulf %3, %2 : vector<2x1024xf32>
    %c0_2 = arith.constant 0 : index
    %c0_3 = arith.constant 0 : index
    %5 = vector.load %arg3[%c0_2, %c0_3] : memref<2x1024xf32, #tpu.memory_space<vmem>>, vector<2x1024xf32>
    tpu.vector_store %arg3[%c0_2, %c0_3], %4 {strides = array<i32>} : memref<2x1024xf32, #tpu.memory_space<vmem>>, vector<2x1024xf32>,
    return
  }
  func.func @transform_0(%arg0: i32) -> i32 {
    %c0_i32 = arith.constant 0 : i32
    %c0_i32_0 = arith.constant 0 : i32
    return %c0_i32 : i32
  }
  func.func @transform_1(%arg0: i32) -> (i32, i32) {
    %c0_i32 = arith.constant 0 : i32
    %c0_i32_0 = arith.constant 0 : i32
    return %arg0, %c0_i32 : i32, i32
  }
  func.func @transform_2(%arg0: i32) -> (i32, i32) {
    %c0_i32 = arith.constant 0 : i32
    %c0_i32_0 = arith.constant 0 : i32
    return %arg0, %c0_i32 : i32, i32
  }
}

</mosaic_0001>

<llo_original>
// kernel: tpu_custom_call.1
$region0: #{tpu_custom_call.1}
  #allocation0 [shape = 'u32[]', space=smem, size = 0x4, offset = 0x4, fixed_abs, tag = 'smem constant byte address 0x4 - core index']
  #allocation1 [shape = 'u32[144,128]{1,0:T(1,128)}', space=vmem, size = 0x12000, scoped, tag = 'internal scratch']
  #allocation2 [shape = 'f32[1]{0:T(128)S(6)}', space=smem, size = 0x200, scoped, tag = 'scoped memory for tpu_custom_call.1']
  %s0 = inlined_call_operand.<no memory space> [shape: f32[1], index: 0, kind: input, shape index: {}]
  %s1 = inlined_call_operand.hbm [shape: f32[2,1024], index: 1, kind: input, shape index: {}, may-alias: {1,2}]
  %s2 = inlined_call_operand.hbm [shape: f32[2,1024], index: 2, kind: output, shape index: {}, may-alias: {1,2}]
  %s3 = sld [smem:[#allocation0]]
  $region22: #{tpu_custom_call.1} parent=0
    _
  %s5 = ssub.s32 1, %s3
  %s6 = scalar_select 0, %s5, %s3
  %7 = sst [smem:[#allocation2]] %s0
  $region1: #{tpu_custom_call.1} parent=0
    #allocation3 [shape = 'u8[8192]{0}', space=vmem, size = 0x2000, scoped, tag = 'input window, operand 1, single buffered']
    #allocation4 [shape = 's32[1]{0}', space=sflag, size = 0x4, scoped, tag = 'scoped memory for tpu_custom_call.1']
    #allocation5 [shape = 's32[1]{0}', space=sflag, size = 0x4, scoped, tag = 'scoped memory for tpu_custom_call.1']
    #allocation6 [shape = 'u8[8192]{0}', space=vmem, size = 0x2000, scoped, tag = 'output window, operand 0, single buffered']
    %8 = vsyncpa [#allocation4], 0
    %9 = vsyncpa [#allocation5], 0
    // Predicated region
    $region2: #{tpu_custom_call.1} parent=1 // pred_check
      _
    $region3: #{tpu_custom_call.1} parent=1 // pred_check_branch
      %11 = sbr.rel (0) target = $region5
    $region4: #{tpu_custom_call.1} parent=1 // pred_region
      _
    $region5: #{tpu_custom_call.1} parent=1 // pred_fallthru
      _
    // Predicated region
    $region6: #{tpu_custom_call.1} parent=1 // pred_check
      _
    $region7: #{tpu_custom_call.1} parent=1 // pred_check_branch
      %13 = sbr.rel (0) target = $region9
    $region8: #{tpu_custom_call.1} parent=1 // pred_region
      %s15 = ssub.s32 256, 256
      %16 = vsyncadd [#allocation4], %s15
      %s18 = sshll.u32 [#allocation3], 4
      %s19 = int_to_ptr.vmem [resolvable:$true] %s18
      %21 = dma.hbm_to_vmem [thread:$0]  %s1, 256, %s19, [#allocation4]
    $region9: #{tpu_custom_call.1} parent=1 // pred_fallthru
      _
    // Predicated region
    $region10: #{tpu_custom_call.1} parent=1 // pred_check
      _
    $region11: #{tpu_custom_call.1} parent=1 // pred_check_branch
      %23 = sbr.rel (0) target = $region13
    $region12: #{tpu_custom_call.1} parent=1 // pred_region
      %24 = dma.done [#allocation4], 256
    $region13: #{tpu_custom_call.1} parent=1 // pred_fallthru
      _
    %s25 = sld [smem:[#allocation2]]
    %s26 = ssub.f32 0.0, %s25
    %v27 = vld [vmem:[#allocation3] sm:$0xff]
    %v28 = vld [vmem:[#allocation3 + $0x8] sm:$0xff]
    %v29 = vstv %s26
    %v30 = vmul.f32 %v29, %v27
    %v31 = vmul.f32 %v29, %v28
    %32 = vst [vmem:[#allocation6] sm:$0xff] %v30
    %33 = vst [vmem:[#allocation6 + $0x8] sm:$0xff] %v31
    // Predicated region
    $region14: #{tpu_custom_call.1} parent=1 // pred_check
      _
    $region15: #{tpu_custom_call.1} parent=1 // pred_check_branch
      %35 = sbr.rel (0) target = $region17
    $region16: #{tpu_custom_call.1} parent=1 // pred_region
      %s37 = ssub.s32 256, 256
      %38 = vsyncadd [#allocation5], %s37
      %s40 = sshll.u32 [#allocation6], 4
      %s41 = int_to_ptr.vmem [resolvable:$true] %s40
      %43 = dma.vmem_to_hbm [thread:$0]  %s41, 256, %s2, [#allocation5]
    $region17: #{tpu_custom_call.1} parent=1 // pred_fallthru
      _
    // Predicated region
    $region18: #{tpu_custom_call.1} parent=1 // pred_check
      _
    $region19: #{tpu_custom_call.1} parent=1 // pred_check_branch
      %45 = sbr.rel (0) target = $region21
    $region20: #{tpu_custom_call.1} parent=1 // pred_region
      %46 = dma.done [#allocation5], 256
    $region21: #{tpu_custom_call.1} parent=1 // pred_fallthru
      _
    %47 = vsyncpa [#allocation4], 1
    %48 = vsyncpa [#allocation5], 1

</llo_original>
